<compile_context>
chip_gen: v5e
topology: v5e:2x2
jax: 0.10.0
libtpu: 0.0.40
codegen_flags: <defaults>
</compile_context>

<pallas_src>
import jax
import jax.numpy as jnp
from jax.experimental import pallas as pl
from jax.experimental.pallas import tpu as pltpu


def _round_up(v, m):
    return (v + m - 1) // m * m


def _make_gin_kernel(has_xtile: bool, ch: int):
    """Fused GIN kernel.

    Refs (in order):
      xsrc_ref : (1, C, Nsrc) f32   gather source (x or y), resident across n tiles
      [xtile_ref:(1, C, tn)  f32]   center features (only when y is not None)
      idx_ref  : (1, K, tn)  i32    neighbour ids (edge_index[0]), N on lanes
      w_ref    : (OC, C)     f32    block-diagonal grouped 1x1 conv weight
      b_ref    : (OC, 1)     f32
      eps_ref  : (1,)        f32    SMEM scalar
      o_ref    : (1, OC, tn)
      agg_ref  : (Nsrc, tn)  bf16   VMEM scratch (neighbour-count matrix)
    """

    def kernel(*refs):
        if has_xtile:
            xsrc_ref, xtile_ref, idx_ref, w_ref, b_ref, eps_ref, o_ref, agg_ref = refs
        else:
            xsrc_ref, idx_ref, w_ref, b_ref, eps_ref, o_ref, agg_ref = refs
            xtile_ref = None

        idx = idx_ref[0]                               # (K, tn) int32
        K, tn = idx.shape
        nsrc = agg_ref.shape[0]
        n_chunks = nsrc // ch

        # Count matrix agg[m, n] = #{k : idx[k, n] == m}, built write-once per
        # (ch x tn) sublane chunk with the K loop innermost: the accumulator
        # stays in vregs as int32 (no per-k float cast) and each chunk is stored
        # to the VMEM scratch exactly once, already cast to bf16.
        base_rows = jax.lax.broadcasted_iota(jnp.int32, (ch, tn), 0)

        @pl.loop(0, n_chunks)
        def _(c):
            r0 = pl.multiple_of(c * ch, ch)
            idx_c = idx - r0                           # shift ids into chunk range
            acc = jnp.zeros((ch, tn), jnp.int32)
            for k in range(K):                         # K small & static -> unrolled
                acc = acc + (idx_c[k:k + 1, :] == base_rows).astype(jnp.int32)
            agg_ref[pl.ds(r0, ch), :] = acc.astype(jnp.bfloat16)

        # Neighbour-sum gather as ONE lane-dense bf16 MXU matmul:
        #   (C, Nsrc)bf16 @ (Nsrc, tn)bf16 -> (C, tn) f32 accumulate.
        xsrc_bf = xsrc_ref[0].astype(jnp.bfloat16)
        x_j = jnp.dot(xsrc_bf, agg_ref[...], preferred_element_type=jnp.float32)

        if has_xtile:
            x_tile = xtile_ref[0]                      # (C, tn) f32
        else:
            # y=None path: center tile is a slice of the already-resident xsrc
            # block -- no second HBM->VMEM stream for x.
            start = pl.multiple_of(pl.program_id(1) * tn, 128)
            x_tile = xsrc_ref[0, :, pl.ds(start, tn)]  # (C, tn) f32

        eps = eps_ref[0]
        feat = (1.0 + eps) * x_tile + x_j              # (C, tn) f32

        # Grouped 1x1 conv == block-diagonal matmul (f32), then bias + ReLU.
        # TODO(synk): for small-N / wide-channel layers, replace the dense
        # block-diagonal weight with a per-group (groups,OCg,ICg)x(groups,ICg,tn)
        # contraction (75% of these MACs are structural zeros).
        out = jnp.dot(w_ref[...], feat, preferred_element_type=jnp.float32)
        out = jnp.maximum(out + b_ref[...], 0.0)
        o_ref[0] = out.astype(o_ref.dtype)

    return kernel


def ginconv2d_pallas(x, edge_index, weight, bias, eps, y=None, groups=4):
    """GINConv2d forward.

    x: (B, C, N, 1) f32; edge_index: (2, B, N, K) i32 (GIN uses [0] only)
    weight: (OC, C//groups, 1, 1); bias: (OC,); eps: scalar
    y: optional gather source (B, C, Nsrc, 1); returns (B, OC, N, 1)
    """
    B, C, N, W1 = x.shape
    assert W1 == 1
    OC, ICg = weight.shape[0], weight.shape[1]
    OCg = OC // groups
    assert ICg * groups == C and OCg * groups == OC
    K = edge_index.shape[-1]

    xs = x[..., 0].astype(jnp.float32)                           # (B, C, N)
    has_xtile = y is not None
    src = xs if y is None else y[..., 0].astype(jnp.float32)     # (B, C, Nsrc)
    Nsrc = src.shape[2]

    # --- chip-aware tile / VMEM budget --------------------------------------
    try:
        vmem_cap = int(pltpu.get_tpu_info().vmem_capacity_bytes)
    except Exception:
        vmem_cap = 64 << 20                      # v7x-safe fallback
    big_vmem = vmem_cap >= (100 << 20)           # v5e/v6e (128 MiB) vs v7x (64 MiB)

    n_pad = _round_up(N, 128)
    if big_vmem and n_pad >= 1024 and n_pad % 512 == 0:
        tn = 512                                 # v5e/v6e: bigger lane-dense tiles
    elif n_pad % 256 == 0:
        tn = 256                                 # v7x cap
    else:
        tn = 128
    nsrc_pad = n_pad if y is None else _round_up(Nsrc, 128)

    # Pad vertex axes to full lane-dense tiles (avoids masked partial stores and
    # ragged agg temps); padded neighbours point at vertex 0, padded output
    # columns are cropped below.
    xs_p = jnp.pad(xs, ((0, 0), (0, 0), (0, n_pad - N)))
    src_p = xs_p if y is None else jnp.pad(src, ((0, 0), (0, 0), (0, nsrc_pad - Nsrc)))
    idx_p = jnp.pad(
        jnp.transpose(edge_index[0].astype(jnp.int32), (0, 2, 1)),  # (B, K, N)
        ((0, 0), (0, 0), (0, n_pad - N)))

    # Grouped 1x1 conv as dense block-diagonal (OC, C) weight (contiguous groups).
    w2 = weight[:, :, 0, 0].astype(jnp.float32)
    Wbd = jnp.zeros((OC, C), jnp.float32)
    for g in range(groups):
        Wbd = Wbd.at[g * OCg:(g + 1) * OCg, g * ICg:(g + 1) * ICg].set(
            w2[g * OCg:(g + 1) * OCg])
    b2d = bias.reshape(OC, 1).astype(jnp.float32)
    eps1 = jnp.asarray(eps, jnp.float32).reshape(1)

    ch = 32                                      # sublane chunk for the count build

    # VMEM budget: single-buffered f32 xsrc (+ bf16 MXU cast temp) + bf16 agg
    # scratch + double-buffered idx/out tiles + weights + temps, with headroom,
    # clamped to the chip's capacity (v7x = 64 MiB/TC).
    need = (C * nsrc_pad * 6
            + nsrc_pad * tn * 2
            + 2 * K * tn * 4 + 2 * OC * tn * 4
            + (2 * C * tn * 4 if has_xtile else 0)
            + OC * C * 4 + 8 * C * tn * 4)
    vmem_limit = int(min(max(need + (8 << 20), 32 << 20),
                         (vmem_cap * 3) // 4, 96 << 20))

    in_specs = [
        # Gather source: whole (C, Nsrc) block, VMEM-resident across n tiles.
        # Single-buffered: it only changes at a b boundary.
        pl.BlockSpec((1, C, nsrc_pad), lambda b, n: (b, 0, 0),
                     pipeline_mode=pl.Buffered(1)),
    ]
    args = [src_p]
    if has_xtile:
        in_specs.append(pl.BlockSpec((1, C, tn), lambda b, n: (b, 0, n)))
        args.append(xs_p)
    in_specs += [
        pl.BlockSpec((1, K, tn), lambda b, n: (b, 0, n)),            # neighbour ids
        pl.BlockSpec((OC, C), lambda b, n: (0, 0), pipeline_mode=pl.Buffered(1)),
        pl.BlockSpec((OC, 1), lambda b, n: (0, 0), pipeline_mode=pl.Buffered(1)),
        pl.BlockSpec(memory_space=pltpu.MemorySpace.SMEM),           # eps scalar
    ]
    args += [idx_p, Wbd, b2d, eps1]

    # TODO(synk): for very large N, scalar-prefetch per-(b, n-tile) neighbour-id
    # ranges and skip empty Nsrc chunks with pl.when (count build + aggregation
    # matmul are O(N^2) while the true work is O(N*K)).
    out = pl.pallas_call(
        _make_gin_kernel(has_xtile, ch),
        out_shape=jax.ShapeDtypeStruct((B, OC, n_pad), x.dtype),
        grid=(B, n_pad // tn),
        in_specs=in_specs,
        out_specs=pl.BlockSpec((1, OC, tn), lambda b, n: (b, 0, n)),
        scratch_shapes=[pltpu.VMEM((nsrc_pad, tn), jnp.bfloat16)],
        compiler_params=pltpu.CompilerParams(
            dimension_semantics=("parallel", "parallel"),
            vmem_limit_bytes=vmem_limit,
        ),
    )(*args)
    return out[:, :, :N, None]                                       # (B, OC, N, 1)


def ginconv2d_ref(x, edge_index, weight, bias, eps, y=None, groups=4):
    """Pure-JAX reference mimicking the PyTorch GINConv2d module exactly."""
    B, C, N, _ = x.shape
    OC, ICg = weight.shape[0], weight.shape[1]
    OCg = OC // groups
    xs = x[..., 0]                                    # (B, C, N)
    src = xs if y is None else y[..., 0]              # (B, C, Nsrc)
    gather = jax.vmap(lambda sb, ib: sb[:, ib])       # (C,Ns),(N,K)->(C,N,K)
    x_j = gather(src, edge_index[0])                  # (B, C, N, K)
    x_j = jnp.sum(x_j, axis=-1)                       # (B, C, N)
    feat = (1.0 + eps) * xs + x_j
    outs = []
    for g in range(groups):
        fg = feat[:, g * ICg:(g + 1) * ICg]
        wg = weight[g * OCg:(g + 1) * OCg, :, 0, 0]
        outs.append(jnp.einsum('oc,bcn->bon', wg, fg,
                               precision=jax.lax.Precision.HIGHEST))
    out = jnp.concatenate(outs, axis=1) + bias[None, :, None]
    return jnp.maximum(out, 0.0)[..., None]


if __name__ == "__main__":
    key = jax.random.PRNGKey(0)
    B, C, N, K = 2, 8, 16, 8          # batch, in_channels, num_vertices, knn
    OC, G = 16, 4                     # out_channels, groups (BasicConv hardcodes 4)
    k1, k2, k3, k4, k5, k6 = jax.random.split(key, 6)

    x = jax.random.normal(k1, (B, C, N, 1), jnp.float32)
    edge_index = jax.random.randint(k2, (2, B, N, K), 0, N, jnp.int32)

    ICg = C // G
    bound = 1.0 / (ICg ** 0.5)
    weight = jax.random.uniform(k3, (OC, ICg, 1, 1), jnp.float32, -bound, bound)
    bias = jax.random.uniform(k4, (OC,), jnp.float32, -bound, bound)
    eps = jnp.float32(0.25)           # learnable GIN epsilon (module inits to 0.0)

    # --- y=None path (module default) ---
    out = jax.block_until_ready(
        ginconv2d_pallas(x, edge_index, weight, bias, eps, groups=G))
    ref = ginconv2d_ref(x, edge_index, weight, bias, eps, groups=G)
    assert out.shape == (B, OC, N, 1), out.shape
    err = float(jnp.max(jnp.abs(out - ref)))
    # bf16 aggregation matmul on the MXU -> bf16-level tolerance vs HIGHEST ref.
    assert jnp.allclose(out, ref, atol=5e-2, rtol=5e-2), err

    # --- y (separate gather source) path ---
    Ns = 24
    yv = jax.random.normal(k5, (B, C, Ns, 1), jnp.float32)
    edge_index_y = jax.random.randint(k6, (2, B, N, K), 0, Ns, jnp.int32)
    out_y = jax.block_until_ready(
        ginconv2d_pallas(x, edge_index_y, weight, bias, eps, y=yv, groups=G))
    ref_y = ginconv2d_ref(x, edge_index_y, weight, bias, eps, y=yv, groups=G)
    err_y = float(jnp.max(jnp.abs(out_y - ref_y)))
    assert jnp.allclose(out_y, ref_y, atol=5e-2, rtol=5e-2), err_y

    print("KERNEL_OK")
</pallas_src>

<mosaic_0001>
module attributes {stable_mosaic.version = 11 : i64} {
  func.func @kernel(%arg0: i32, %arg1: i32, %arg2: memref<1x8x128xf32, #tpu.memory_space<vmem>>, %arg3: memref<1x8x128xi32, #tpu.memory_space<vmem>>, %arg4: memref<16x8xf32, #tpu.memory_space<vmem>>, %arg5: memref<16x1xf32, #tpu.memory_space<vmem>>, %arg6: memref<1xf32, #tpu.memory_space<smem>>, %arg7: memref<1x16x128xf32, #tpu.memory_space<vmem>>, %arg8: memref<128x128xbf16, #tpu.memory_space<vmem>>) attributes {dimension_semantics = [#tpu.dimension_semantics<parallel>, #tpu.dimension_semantics<parallel>], iteration_bounds = array<i64: 2, 1>, scalar_prefetch = 0 : i64, scratch_operands = 1 : i64, tpu.core_type = #tpu.core_type<tc>, window_params = [{pipeline_mode = #tpu.pipeline_mode<synchronous>, transform_indices = @transform_0, window_bounds = array<i64: 1, 8, 128>}, {transform_indices = @transform_1, window_bounds = array<i64: 1, 8, 128>}, {pipeline_mode = #tpu.pipeline_mode<synchronous>, transform_indices = @transform_2, window_bounds = array<i64: 16, 8>}, {pipeline_mode = #tpu.pipeline_mode<synchronous>, transform_indices = @transform_3, window_bounds = array<i64: 16, 1>}, {transform_indices = @transform_4, window_bounds = array<i64: 1>}, {transform_indices = @transform_5, window_bounds = array<i64: 1, 16, 128>}]} {
    %c0 = arith.constant 0 : index
    %c0_0 = arith.constant 0 : index
    %c0_1 = arith.constant 0 : index
    %0 = vector.load %arg3[%c0, %c0_0, %c0_1] : memref<1x8x128xi32, #tpu.memory_space<vmem>>, vector<1x8x128xi32>
    %1 = vector.shape_cast %0 : vector<1x8x128xi32> to vector<8x128xi32>
    %2 = tpu.iota {dimensions = array<i32: 0>} : vector<32x128xi32>
    %c0_i32 = arith.constant 0 : i32
    %c4_i32 = arith.constant 4 : i32
    %3 = arith.addi %c0_i32, %c4_i32 : i32
    %c1_i32 = arith.constant 1 : i32
    scf.for %arg9 = %c0_i32 to %3 step %c1_i32  : i32 {
      %c1_i32_21 = arith.constant 1 : i32
      %29 = arith.muli %arg9, %c1_i32_21 : i32
      %c0_i32_22 = arith.constant 0 : i32
      %30 = arith.addi %c0_i32_22, %29 : i32
      %c32_i32 = arith.constant 32 : i32
      %31 = arith.muli %30, %c32_i32 : i32
      %32 = tpu.assume_multiple %31, 32 : i32
      %33 = vector.broadcast %32 : i32 to vector<8x128xi32>
      %34 = arith.subi %1, %33 : vector<8x128xi32>
      %c0_i32_23 = arith.constant 0 : i32
      %35 = vector.broadcast %c0_i32_23 : i32 to vector<32x128xi32>
      %36 = vector.extract_strided_slice %34 {offsets = [0, 0], sizes = [1, 128], strides = [1, 1]} : vector<8x128xi32> to vector<1x128xi32>
      %37 = vector.broadcast %36 : vector<1x128xi32> to vector<32x128xi32>
      %38 = arith.cmpi eq, %37, %2 : vector<32x128xi32>
      %39 = arith.extui %38 : vector<32x128xi1> to vector<32x128xi32>
      %40 = arith.addi %35, %39 : vector<32x128xi32>
      %41 = vector.extract_strided_slice %34 {offsets = [1, 0], sizes = [1, 128], strides = [1, 1]} : vector<8x128xi32> to vector<1x128xi32>
      %42 = vector.broadcast %41 : vector<1x128xi32> to vector<32x128xi32>
      %43 = arith.cmpi eq, %42, %2 : vector<32x128xi32>
      %44 = arith.extui %43 : vector<32x128xi1> to vector<32x128xi32>
      %45 = arith.addi %40, %44 : vector<32x128xi32>
      %46 = vector.extract_strided_slice %34 {offsets = [2, 0], sizes = [1, 128], strides = [1, 1]} : vector<8x128xi32> to vector<1x128xi32>
      %47 = vector.broadcast %46 : vector<1x128xi32> to vector<32x128xi32>
      %48 = arith.cmpi eq, %47, %2 : vector<32x128xi32>
      %49 = arith.extui %48 : vector<32x128xi1> to vector<32x128xi32>
      %50 = arith.addi %45, %49 : vector<32x128xi32>
      %51 = vector.extract_strided_slice %34 {offsets = [3, 0], sizes = [1, 128], strides = [1, 1]} : vector<8x128xi32> to vector<1x128xi32>
      %52 = vector.broadcast %51 : vector<1x128xi32> to vector<32x128xi32>
      %53 = arith.cmpi eq, %52, %2 : vector<32x128xi32>
      %54 = arith.extui %53 : vector<32x128xi1> to vector<32x128xi32>
      %55 = arith.addi %50, %54 : vector<32x128xi32>
      %56 = vector.extract_strided_slice %34 {offsets = [4, 0], sizes = [1, 128], strides = [1, 1]} : vector<8x128xi32> to vector<1x128xi32>
      %57 = vector.broadcast %56 : vector<1x128xi32> to vector<32x128xi32>
      %58 = arith.cmpi eq, %57, %2 : vector<32x128xi32>
      %59 = arith.extui %58 : vector<32x128xi1> to vector<32x128xi32>
      %60 = arith.addi %55, %59 : vector<32x128xi32>
      %61 = vector.extract_strided_slice %34 {offsets = [5, 0], sizes = [1, 128], strides = [1, 1]} : vector<8x128xi32> to vector<1x128xi32>
      %62 = vector.broadcast %61 : vector<1x128xi32> to vector<32x128xi32>
      %63 = arith.cmpi eq, %62, %2 : vector<32x128xi32>
      %64 = arith.extui %63 : vector<32x128xi1> to vector<32x128xi32>
      %65 = arith.addi %60, %64 : vector<32x128xi32>
      %66 = vector.extract_strided_slice %34 {offsets = [6, 0], sizes = [1, 128], strides = [1, 1]} : vector<8x128xi32> to vector<1x128xi32>
      %67 = vector.broadcast %66 : vector<1x128xi32> to vector<32x128xi32>
      %68 = arith.cmpi eq, %67, %2 : vector<32x128xi32>
      %69 = arith.extui %68 : vector<32x128xi1> to vector<32x128xi32>
      %70 = arith.addi %65, %69 : vector<32x128xi32>
      %71 = vector.extract_strided_slice %34 {offsets = [7, 0], sizes = [1, 128], strides = [1, 1]} : vector<8x128xi32> to vector<1x128xi32>
      %72 = vector.broadcast %71 : vector<1x128xi32> to vector<32x128xi32>
      %73 = arith.cmpi eq, %72, %2 : vector<32x128xi32>
      %74 = arith.extui %73 : vector<32x128xi1> to vector<32x128xi32>
      %75 = arith.addi %70, %74 : vector<32x128xi32>
      %76 = arith.sitofp %75 : vector<32x128xi32> to vector<32x128xbf16>
      %77 = arith.index_cast %32 : i32 to index
      %c0_24 = arith.constant 0 : index
      %78 = vector.load %arg8[%77, %c0_24] : memref<128x128xbf16, #tpu.memory_space<vmem>>, vector<32x128xbf16>
      tpu.vector_store %arg8[%77, %c0_24], %76 {strides = array<i32>} : memref<128x128xbf16, #tpu.memory_space<vmem>>, vector<32x128xbf16>,
    }
    %c4_i32_2 = arith.constant 4 : i32
    %c0_3 = arith.constant 0 : index
    %c0_4 = arith.constant 0 : index
    %c0_5 = arith.constant 0 : index
    %4 = vector.load %arg2[%c0_3, %c0_4, %c0_5] : memref<1x8x128xf32, #tpu.memory_space<vmem>>, vector<1x8x128xf32>
    %5 = vector.shape_cast %4 : vector<1x8x128xf32> to vector<8x128xf32>
    %6 = arith.truncf %5 : vector<8x128xf32> to vector<8x128xbf16>
    %c0_6 = arith.constant 0 : index
    %c0_7 = arith.constant 0 : index
    %7 = vector.load %arg8[%c0_6, %c0_7] : memref<128x128xbf16, #tpu.memory_space<vmem>>, vector<128x128xbf16>
    %cst = arith.constant dense<0.000000e+00> : vector<8x128xf32>
    %8 = tpu.matmul %6, %7, %cst {dimension_numbers = #tpu.dot_dimension_numbers<[1], [0], [0], [1], [0, 0, 1, 1], [], []>} : vector<8x128xbf16>, vector<128x128xbf16>, vector<8x128xf32> -> vector<8x128xf32>
    %c128_i32 = arith.constant 128 : i32
    %9 = arith.muli %arg1, %c128_i32 : i32
    %10 = tpu.assume_multiple %9, 128 : i32
    %c0_8 = arith.constant 0 : index
    %c0_9 = arith.constant 0 : index
    %11 = arith.index_cast %10 : i32 to index
    %12 = vector.load %arg2[%c0_8, %c0_9, %11] : memref<1x8x128xf32, #tpu.memory_space<vmem>>, vector<1x8x128xf32>
    %13 = vector.shape_cast %12 : vector<1x8x128xf32> to vector<8x128xf32>
    %c0_10 = arith.constant 0 : index
    %14 = memref.load %arg6[%c0_10] : memref<1xf32, #tpu.memory_space<smem>>
    %cst_11 = arith.constant 1.000000e+00 : f32
    %15 = arith.addf %cst_11, %14 : f32
    %16 = vector.broadcast %15 : f32 to vector<8x128xf32>
    %17 = arith.mulf %16, %13 : vector<8x128xf32>
    %18 = arith.addf %17, %8 : vector<8x128xf32>
    %c0_12 = arith.constant 0 : index
    %c0_13 = arith.constant 0 : index
    %19 = vector.load %arg4[%c0_12, %c0_13] : memref<16x8xf32, #tpu.memory_space<vmem>>, vector<16x8xf32>
    %cst_14 = arith.constant dense<0.000000e+00> : vector<16x128xf32>
    %20 = tpu.matmul %19, %18, %cst_14 {dimension_numbers = #tpu.dot_dimension_numbers<[1], [0], [0], [1], [0, 0, 1, 1], [], []>} : vector<16x8xf32>, vector<8x128xf32>, vector<16x128xf32> -> vector<16x128xf32>
    %c0_15 = arith.constant 0 : index
    %c0_16 = arith.constant 0 : index
    %21 = vector.load %arg5[%c0_15, %c0_16] : memref<16x1xf32, #tpu.memory_space<vmem>>, vector<16x1xf32>
    %22 = vector.broadcast %21 : vector<16x1xf32> to vector<16x128xf32>
    %23 = arith.addf %20, %22 : vector<16x128xf32>
    %cst_17 = arith.constant 0.000000e+00 : f32
    %24 = vector.broadcast %cst_17 : f32 to vector<16x128xf32>
    %25 = arith.maximumf %23, %24 : vector<16x128xf32>
    %c0_18 = arith.constant 0 : index
    %c0_19 = arith.constant 0 : index
    %c0_20 = arith.constant 0 : index
    %26 = vector.load %arg7[%c0_18, %c0_19, %c0_20] : memref<1x16x128xf32, #tpu.memory_space<vmem>>, vector<1x16x128xf32>
    %27 = vector.shape_cast %26 : vector<1x16x128xf32> to vector<16x128xf32>
    %28 = vector.shape_cast %25 : vector<16x128xf32> to vector<1x16x128xf32>
    tpu.vector_store %arg7[%c0_18, %c0_19, %c0_20], %28 {strides = array<i32>} : memref<1x16x128xf32, #tpu.memory_space<vmem>>, vector<1x16x128xf32>,
    return
  }
  func.func @transform_0(%arg0: i32, %arg1: i32) -> (i32, i32, i32) {
    %c0_i32 = arith.constant 0 : i32
    %c0_i32_0 = arith.constant 0 : i32
    %c0_i32_1 = arith.constant 0 : i32
    return %arg0, %c0_i32, %c0_i32_0 : i32, i32, i32
  }
  func.func @transform_1(%arg0: i32, %arg1: i32) -> (i32, i32, i32) {
    %c0_i32 = arith.constant 0 : i32
    %c0_i32_0 = arith.constant 0 : i32
    return %arg0, %c0_i32, %arg1 : i32, i32, i32
  }
  func.func @transform_2(%arg0: i32, %arg1: i32) -> (i32, i32) {
    %c0_i32 = arith.constant 0 : i32
    %c0_i32_0 = arith.constant 0 : i32
    %c0_i32_1 = arith.constant 0 : i32
    return %c0_i32, %c0_i32_0 : i32, i32
  }
  func.func @transform_3(%arg0: i32, %arg1: i32) -> (i32, i32) {
    %c0_i32 = arith.constant 0 : i32
    %c0_i32_0 = arith.constant 0 : i32
    %c0_i32_1 = arith.constant 0 : i32
    return %c0_i32, %c0_i32_0 : i32, i32
  }
  func.func @transform_4(%arg0: i32, %arg1: i32) -> i32 {
    %c0_i32 = arith.constant 0 : i32
    %c0_i32_0 = arith.constant 0 : i32
    return %c0_i32 : i32
  }
  func.func @transform_5(%arg0: i32, %arg1: i32) -> (i32, i32, i32) {
    %c0_i32 = arith.constant 0 : i32
    %c0_i32_0 = arith.constant 0 : i32
    return %arg0, %c0_i32, %arg1 : i32, i32, i32
  }
}

</mosaic_0001>

<llo_original>
// kernel: tpu_custom_call.1
$region0: #{tpu_custom_call.1}
  #allocation0 [shape = 'u32[]', space=smem, size = 0x4, offset = 0x4, fixed_abs, tag = 'smem constant byte address 0x4 - core index']
  #allocation1 [shape = 'u32[72,128]{1,0:T(1,128)}', space=vmem, size = 0x9000, scoped, tag = 'internal scratch']
  #allocation2 [shape = 'bf16[128,128]{1,0:T(8,128)(2,1)}', space=vmem, size = 0x8000, scoped, tag = 'scratch operand']
  #allocation3 [shape = 'f32[1]{0:T(128)S(6)}', space=smem, size = 0x200, scoped, tag = 'scoped memory for tpu_custom_call.1']
  %s0 = inlined_call_operand.vmem [shape: f32[2,8,128], index: 0, kind: input, shape index: {}]
  %s1 = inlined_call_operand.vmem [shape: s32[2,8,128], index: 1, kind: input, shape index: {}]
  %s2 = inlined_call_operand.vmem [shape: f32[16,8], index: 2, kind: input, shape index: {}]
  %s3 = inlined_call_operand.vmem [shape: f32[16,1], index: 3, kind: input, shape index: {}]
  %s4 = inlined_call_operand.<no memory space> [shape: f32[1], index: 4, kind: input, shape index: {}]
  %s5 = inlined_call_operand.hbm [shape: f32[2,16,128], index: 5, kind: output, shape index: {}]
  %s6 = sld [smem:[#allocation0]]
  $region60: #{tpu_custom_call.1} parent=0
    _
  %s8 = ssub.s32 1, %s6
  %s9 = scalar_select 0, %s8, %s6
  %10 = sst [smem:[#allocation3]] %s4
  $region1: #{tpu_custom_call.1} parent=0
    #allocation4 [shape = 'u8[16384]{0}', space=vmem, size = 0x4000, scoped, tag = 'output window, operand 0']
    #allocation5 [shape = 's32[2]{0}', space=sflag, size = 0x8, scoped, tag = 'scoped memory for tpu_custom_call.1']
    %11 = vsyncpa [#allocation5], 0
    %s12 = scalar_lea.sflag [#allocation5], 1
    %13 = vsyncpa %s12, 0
    loop: start=0, step=1, limit=4
    $region2: #{tpu_custom_call.1} parent=1 // loop_pre_header
      _
    $region3: #{tpu_custom_call.1} parent=1 // loop_header
      %s15 = sphi 0, %s19
      %p16 = scmp.ge.s32.totalorder %s15, 4
      %s22 = sphi 0, %s34
      %s23 = sphi 0, %s30
      %s24 = sphi 0, %s22
      %s25 = sphi 0, %s23
      %s26 = sphi 0, %s24
      %s27 = sphi 0, %s25
      %s37 = sphi 0, %s39
      %s40 = sphi 0, %s37
      %s41 = sphi 0, %s40
      %s57 = sphi 0, %s41
      %s65 = sphi 0, %s67
      %s68 = sphi 0, %s65
      %s69 = sphi 0, %s68
      %s85 = sphi 0, %s69
      %s89 = sphi 0, %s89
      %s91 = sphi 0, %s89
      %s92 = sphi 0, %s91
      %s106 = sphi 0, %s92
      %s110 = sphi 0, %s110
      %s112 = sphi 0, %s110
      %s113 = sphi 0, %s112
      %s127 = sphi 0, %s113
      %s131 = sphi 0, %s131
      %s133 = sphi 0, %s131
      %s134 = sphi 0, %s133
      %s148 = sphi 0, %s134
      %s156 = sphi 0, %s158
      %s159 = sphi 0, %s156
      %s160 = sphi 0, %s159
      %s176 = sphi 0, %s160
    $region4: #{tpu_custom_call.1} parent=1 // loop_header_branch
      %18 = sbr.rel (%p16) target = $region8
    $region5: #{tpu_custom_call.1} parent=1 // loop_body
      %s20 = ssub.s32 %s15, 1
      %s21 = ssub.s32 %s15, 2
      %s28 = sadd.s32 1, %s23
      %p29 = scmp.ge.s32.totalorder %s28, 1
      %s30 = scalar_select %p29, 0, %s28
      %s31 = sadd.s32 1, %s22
      %s32 = scalar_select %p29, %s31, %s22
      %p33 = scmp.ge.s32.totalorder %s32, 2
      %s34 = scalar_select %p33, 0, %s32
      %s35 = ssub.s32 %s22, %s34
      %p36 = scmp.eq.s32.totalorder %s35, 0
      %s38 = sadd.s32 %s37, 1
      %s39 = scalar_select %p36, %s37, %s38
      %p42 = pneg %p36
      %p43 = scmp.eq.s32.totalorder %s15, 1
      %p44 = por %p42, %p43
      %p45 = scmp.ne.s32.totalorder %s37, %s40
      %p46 = scmp.eq.s32.totalorder %s15, 0
      %p47 = por %p45, %p46
      %p48 = scmp.ne.s32.totalorder %s37, %s40
      %p49 = scmp.eq.s32.totalorder %s20, 1
      %p50 = por %p48, %p49
      %p51 = scmp.ne.s32.totalorder %s40, %s41
      %p52 = scmp.eq.s32.totalorder %s20, 0
      %p53 = por %p51, %p52
      %p54 = scmp.ne.s32.totalorder %s40, %s41
      %p55 = scmp.eq.s32.totalorder %s21, 1
      %p56 = por %p54, %p55
      %p58 = scmp.ne.s32.totalorder %s41, %s57
      %p59 = scmp.eq.s32.totalorder %s21, 0
      %p60 = por %p58, %p59
      %s61 = ssub.s32 %s22, %s34
      %s62 = ssub.s32 %s23, %s30
      %s63 = sor.u32 %s61, %s62
      %p64 = scmp.eq.s32.totalorder %s63, 0
      %s66 = sadd.s32 %s65, 1
      %s67 = scalar_select %p64, %s65, %s66
      %p70 = pneg %p64
      %p71 = scmp.eq.s32.totalorder %s15, 1
      %p72 = por %p70, %p71
      %p73 = scmp.ne.s32.totalorder %s65, %s68
      %p74 = scmp.eq.s32.totalorder %s15, 0
      %p75 = por %p73, %p74
      %p76 = scmp.ne.s32.totalorder %s65, %s68
      %p77 = scmp.eq.s32.totalorder %s20, 1
      %p78 = por %p76, %p77
      %p79 = scmp.ne.s32.totalorder %s68, %s69
      %p80 = scmp.eq.s32.totalorder %s20, 0
      %p81 = por %p79, %p80
      %p82 = scmp.ne.s32.totalorder %s68, %s69
      %p83 = scmp.eq.s32.totalorder %s21, 1
      %p84 = por %p82, %p83
      %p86 = scmp.ne.s32.totalorder %s69, %s85
      %p87 = scmp.eq.s32.totalorder %s21, 0
      %p88 = por %p86, %p87
      %s90 = sadd.s32 %s89, 1
      %p93 = scmp.eq.s32.totalorder %s15, 1
      %p94 = scmp.ne.s32.totalorder %s89, %s91
      %p95 = scmp.eq.s32.totalorder %s15, 0
      %p96 = por %p94, %p95
      %p97 = scmp.ne.s32.totalorder %s89, %s91
      %p98 = scmp.eq.s32.totalorder %s20, 1
      %p99 = por %p97, %p98
      %p100 = scmp.ne.s32.totalorder %s91, %s92
      %p101 = scmp.eq.s32.totalorder %s20, 0
      %p102 = por %p100, %p101
      %p103 = scmp.ne.s32.totalorder %s91, %s92
      %p104 = scmp.eq.s32.totalorder %s21, 1
      %p105 = por %p103, %p104
      %p107 = scmp.ne.s32.totalorder %s92, %s106
      %p108 = scmp.eq.s32.totalorder %s21, 0
      %p109 = por %p107, %p108
      %s111 = sadd.s32 %s110, 1
      %p114 = scmp.eq.s32.totalorder %s15, 1
      %p115 = scmp.ne.s32.totalorder %s110, %s112
      %p116 = scmp.eq.s32.totalorder %s15, 0
      %p117 = por %p115, %p116
      %p118 = scmp.ne.s32.totalorder %s110, %s112
      %p119 = scmp.eq.s32.totalorder %s20, 1
      %p120 = por %p118, %p119
      %p121 = scmp.ne.s32.totalorder %s112, %s113
      %p122 = scmp.eq.s32.totalorder %s20, 0
      %p123 = por %p121, %p122
      %p124 = scmp.ne.s32.totalorder %s112, %s113
      %p125 = scmp.eq.s32.totalorder %s21, 1
      %p126 = por %p124, %p125
      %p128 = scmp.ne.s32.totalorder %s113, %s127
      %p129 = scmp.eq.s32.totalorder %s21, 0
      %p130 = por %p128, %p129
      %s132 = sadd.s32 %s131, 1
      %p135 = scmp.eq.s32.totalorder %s15, 1
      %p136 = scmp.ne.s32.totalorder %s131, %s133
      %p137 = scmp.eq.s32.totalorder %s15, 0
      %p138 = por %p136, %p137
      %p139 = scmp.ne.s32.totalorder %s131, %s133
      %p140 = scmp.eq.s32.totalorder %s20, 1
      %p141 = por %p139, %p140
      %p142 = scmp.ne.s32.totalorder %s133, %s134
      %p143 = scmp.eq.s32.totalorder %s20, 0
      %p144 = por %p142, %p143
      %p145 = scmp.ne.s32.totalorder %s133, %s134
      %p146 = scmp.eq.s32.totalorder %s21, 1
      %p147 = por %p145, %p146
      %p149 = scmp.ne.s32.totalorder %s134, %s148
      %p150 = scmp.eq.s32.totalorder %s21, 0
      %p151 = por %p149, %p150
      %s152 = ssub.s32 %s22, %s34
      %s153 = ssub.s32 %s23, %s30
      %s154 = sor.u32 %s152, %s153
      %p155 = scmp.eq.s32.totalorder %s154, 0
      %s157 = sadd.s32 %s156, 1
      %s158 = scalar_select %p155, %s156, %s157
      %p161 = pneg %p155
      %p162 = scmp.eq.s32.totalorder %s15, 1
      %p163 = por %p161, %p162
      %p164 = scmp.ne.s32.totalorder %s156, %s159
      %p165 = scmp.eq.s32.totalorder %s15, 0
      %p166 = por %p164, %p165
      %p167 = scmp.ne.s32.totalorder %s156, %s159
      %p168 = scmp.eq.s32.totalorder %s20, 1
      %p169 = por %p167, %p168
      %p170 = scmp.ne.s32.totalorder %s159, %s160
      %p171 = scmp.eq.s32.totalorder %s20, 0
      %p172 = por %p170, %p171
      %p173 = scmp.ne.s32.totalorder %s159, %s160
      %p174 = scmp.eq.s32.totalorder %s21, 1
      %p175 = por %p173, %p174
      %p177 = scmp.ne.s32.totalorder %s160, %s176
      %p178 = scmp.eq.s32.totalorder %s21, 0
      %p179 = por %p177, %p178
      %p180 = scmp.le.s32.totalorder 1, %s15
      %p181 = scmp.lt.s32.totalorder %s15, 3
      %p182 = pnand %p180, %p181
      %p183 = pneg %p182
      // Predicated region
      $region9: #{tpu_custom_call.1} parent=5 // pred_check
        _
      $region10: #{tpu_custom_call.1} parent=5 // pred_check_branch
        %185 = sbr.rel (%p182) target = $region12
      $region11: #{tpu_custom_call.1} parent=5 // pred_region
        %s186 = ssub.s32 %s15, 1
        // Predicated region
        $region13: #{tpu_custom_call.1} parent=11 // pred_check
          %p187 = pneg %p53
        $region14: #{tpu_custom_call.1} parent=11 // pred_check_branch
          %189 = sbr.rel (%p187) target = $region16
        $region15: #{tpu_custom_call.1} parent=11 // pred_region
          %p190 = scmp.lt.s32.totalorder %s24, 1
          %s191 = scalar_select %p190, %s24, 1
          %s192 = smul.addr %s191, 8
          %s193 = scalar_lea.vmem %s0, %s192
        $region16: #{tpu_custom_call.1} parent=11 // pred_fallthru
          _
        // Predicated region
        $region17: #{tpu_custom_call.1} parent=11 // pred_check
          %p194 = pneg %p102
        $region18: #{tpu_custom_call.1} parent=11 // pred_check_branch
          %196 = sbr.rel (%p194) target = $region20
        $region19: #{tpu_custom_call.1} parent=11 // pred_region
          _
        $region20: #{tpu_custom_call.1} parent=11 // pred_fallthru
          _
        // Predicated region
        $region21: #{tpu_custom_call.1} parent=11 // pred_check
          %p197 = pneg %p123
        $region22: #{tpu_custom_call.1} parent=11 // pred_check_branch
          %199 = sbr.rel (%p197) target = $region24
        $region23: #{tpu_custom_call.1} parent=11 // pred_region
          _
        $region24: #{tpu_custom_call.1} parent=11 // pred_fallthru
          _
        // Predicated region
        $region25: #{tpu_custom_call.1} parent=11 // pred_check
          %p200 = pneg %p144
        $region26: #{tpu_custom_call.1} parent=11 // pred_check_branch
          %202 = sbr.rel (%p200) target = $region28
        $region27: #{tpu_custom_call.1} parent=11 // pred_region
          _
        $region28: #{tpu_custom_call.1} parent=11 // pred_fallthru
          _
      $region12: #{tpu_custom_call.1} parent=5 // pred_fallthru
        _
      %p203 = scmp.lt.s32.totalorder %s15, 2
      // Predicated region
      $region29: #{tpu_custom_call.1} parent=5 // pred_check
        %p204 = pneg %p203
      $region30: #{tpu_custom_call.1} parent=5 // pred_check_branch
        %206 = sbr.rel (%p204) target = $region32
      $region31: #{tpu_custom_call.1} parent=5 // pred_region
        // Predicated region
        $region33: #{tpu_custom_call.1} parent=31 // pred_check
          %p207 = pneg %p75
        $region34: #{tpu_custom_call.1} parent=31 // pred_check_branch
          %209 = sbr.rel (%p207) target = $region36
        $region35: #{tpu_custom_call.1} parent=31 // pred_region
          %p210 = scmp.lt.s32.totalorder %s22, 1
          %s211 = scalar_select %p210, %s22, 1
          %p212 = scmp.lt.s32.totalorder %s23, 0
          %s213 = scalar_select %p212, %s23, 0
          %s214 = sadd.s32 %s213, %s211
          %s215 = smul.addr %s214, 8
          %s216 = scalar_lea.vmem %s1, %s215
        $region36: #{tpu_custom_call.1} parent=31 // pred_fallthru
          _
      $region32: #{tpu_custom_call.1} parent=5 // pred_fallthru
        _
      %p217 = scmp.le.s32.totalorder 1, %s15
      %p218 = scmp.lt.s32.totalorder %s15, 3
      %p219 = pnand %p217, %p218
      %p220 = pneg %p219
      // Predicated region
      $region37: #{tpu_custom_call.1} parent=5 // pred_check
        _
      $region38: #{tpu_custom_call.1} parent=5 // pred_check_branch
        %222 = sbr.rel (%p219) target = $region40
      $region39: #{tpu_custom_call.1} parent=5 // pred_region
        %s223 = ssub.s32 %s15, 1
        %p224 = scmp.lt.s32.totalorder %s24, 1
        %s225 = scalar_select %p224, %s24, 1
        %s226 = smul.addr %s225, 8
        %s227 = scalar_lea.vmem %s0, %s226
        %p228 = pneg %p53
        %p229 = pneg %p50
        %p230 = scmp.lt.s32.totalorder %s24, 1
        %s231 = scalar_select %p230, %s24, 1
        %p232 = scmp.lt.s32.totalorder %s25, 0
        %s233 = scalar_select %p232, %s25, 0
        %s234 = sadd.s32 %s233, %s231
        %s235 = smul.addr %s234, 8
        %s236 = scalar_lea.vmem %s1, %s235
        %p237 = pneg %p81
        %p238 = pneg %p78
        %p239 = pneg %p102
        %p240 = pneg %p99
        %p241 = pneg %p123
        %p242 = pneg %p120
        %p243 = pneg %p144
        %p244 = pneg %p141
        %p245 = pneg %p172
        %p246 = pneg %p169
        %s247 = sand.u32 %s159, 1
        %s248 = scalar_lea.sflag [#allocation5], %s247
        %s249 = sand.u32 %s159, 1
        %s250 = smul.addr %s249, 16
        %s251 = scalar_lea.vmem [#allocation4], %s250
        %p252 = scmp.lt.s32.totalorder %s24, 1
        %s253 = scalar_select %p252, %s24, 1
        %s254 = smul.addr %s253, 8
        %s255 = scalar_lea.vmem %s0, %s254
        %p256 = scmp.lt.s32.totalorder %s24, 1
        %s257 = scalar_select %p256, %s24, 1
        %p258 = scmp.lt.s32.totalorder %s25, 0
        %s259 = scalar_select %p258, %s25, 0
        %s260 = sadd.s32 %s259, %s257
        %s261 = smul.addr %s260, 8
        %s262 = scalar_lea.vmem %s1, %s261
        %v263 = vld [vmem:[%s262] sm:$0xff]
        %v264 = vlaneseq
        %v265 = vshrl.u32 %v264, 7
        %v266 = vadd.s32 %v265, 8
        %v267 = vadd.s32 %v265, 16
        %v268 = vadd.s32 %v265, 24
        loop: start=0, step=1, limit=4
        $region41: #{tpu_custom_call.1} parent=39 // loop_pre_header
          _
        $region42: #{tpu_custom_call.1} parent=39 // loop_header
          %s270 = sphi 0, %s274
          %p271 = scmp.ge.s32.totalorder %s270, 4
        $region43: #{tpu_custom_call.1} parent=39 // loop_header_branch
          %273 = sbr.rel (%p271) target = $region47
        $region44: #{tpu_custom_call.1} parent=39 // loop_body
          %s275 = smul.u32 %s270, 32
          %v276 = vstv %s275
          %v277 = vsub.s32 %v263, %v276
          %v278 = vperm.slane %v277, 0
          %vm279 = vcmp.eq.s32.totalorder %v278, %v265
          %vm280 = vcmp.eq.s32.totalorder %v278, %v266
          %vm281 = vcmp.eq.s32.totalorder %v278, %v267
          %vm282 = vcmp.eq.s32.totalorder %v278, %v268
          %v283 = vsel %vm279, 1, 0
          %v284 = vsel %vm280, 1, 0
          %v285 = vsel %vm281, 1, 0
          %v286 = vsel %vm282, 1, 0
          %v287 = vperm.slane %v277, 1
          %vm288 = vcmp.eq.s32.totalorder %v287, %v265
          %vm289 = vcmp.eq.s32.totalorder %v287, %v266
          %vm290 = vcmp.eq.s32.totalorder %v287, %v267
          %vm291 = vcmp.eq.s32.totalorder %v287, %v268
          %v292 = vsel %vm288, 1, 0
          %v293 = vsel %vm289, 1, 0
          %v294 = vsel %vm290, 1, 0
          %v295 = vsel %vm291, 1, 0
          %v296 = vadd.s32 %v283, %v292
          %v297 = vadd.s32 %v284, %v293
          %v298 = vadd.s32 %v285, %v294
          %v299 = vadd.s32 %v286, %v295
          %v300 = vperm.slane %v277, 2
          %vm301 = vcmp.eq.s32.totalorder %v300, %v265
          %vm302 = vcmp.eq.s32.totalorder %v300, %v266
          %vm303 = vcmp.eq.s32.totalorder %v300, %v267
          %vm304 = vcmp.eq.s32.totalorder %v300, %v268
          %v305 = vsel %vm301, 1, 0
          %v306 = vsel %vm302, 1, 0
          %v307 = vsel %vm303, 1, 0
          %v308 = vsel %vm304, 1, 0
          %v309 = vadd.s32 %v296, %v305
          %v310 = vadd.s32 %v297, %v306
          %v311 = vadd.s32 %v298, %v307
          %v312 = vadd.s32 %v299, %v308
          %v313 = vperm.slane %v277, 3
          %vm314 = vcmp.eq.s32.totalorder %v313, %v265
          %vm315 = vcmp.eq.s32.totalorder %v313, %v266
          %vm316 = vcmp.eq.s32.totalorder %v313, %v267
          %vm317 = vcmp.eq.s32.totalorder %v313, %v268
          %v318 = vsel %vm314, 1, 0
          %v319 = vsel %vm315, 1, 0
          %v320 = vsel %vm316, 1, 0
          %v321 = vsel %vm317, 1, 0
          %v322 = vadd.s32 %v309, %v318
          %v323 = vadd.s32 %v310, %v319
          %v324 = vadd.s32 %v311, %v320
          %v325 = vadd.s32 %v312, %v321
          %v326 = vperm.slane %v277, 4
          %vm327 = vcmp.eq.s32.totalorder %v326, %v265
          %vm328 = vcmp.eq.s32.totalorder %v326, %v266
          %vm329 = vcmp.eq.s32.totalorder %v326, %v267
          %vm330 = vcmp.eq.s32.totalorder %v326, %v268
          %v331 = vsel %vm327, 1, 0
          %v332 = vsel %vm328, 1, 0
          %v333 = vsel %vm329, 1, 0
          %v334 = vsel %vm330, 1, 0
          %v335 = vadd.s32 %v322, %v331
          %v336 = vadd.s32 %v323, %v332
          %v337 = vadd.s32 %v324, %v333
          %v338 = vadd.s32 %v325, %v334
          %v339 = vperm.slane %v277, 5
          %vm340 = vcmp.eq.s32.totalorder %v339, %v265
          %vm341 = vcmp.eq.s32.totalorder %v339, %v266
          %vm342 = vcmp.eq.s32.totalorder %v339, %v267
          %vm343 = vcmp.eq.s32.totalorder %v339, %v268
          %v344 = vsel %vm340, 1, 0
          %v345 = vsel %vm341, 1, 0
          %v346 = vsel %vm342, 1, 0
          %v347 = vsel %vm343, 1, 0
          %v348 = vadd.s32 %v335, %v344
          %v349 = vadd.s32 %v336, %v345
          %v350 = vadd.s32 %v337, %v346
          %v351 = vadd.s32 %v338, %v347
          %v352 = vperm.slane %v277, 6
          %vm353 = vcmp.eq.s32.totalorder %v352, %v265
          %vm354 = vcmp.eq.s32.totalorder %v352, %v266
          %vm355 = vcmp.eq.s32.totalorder %v352, %v267
          %vm356 = vcmp.eq.s32.totalorder %v352, %v268
          %v357 = vsel %vm353, 1, 0
          %v358 = vsel %vm354, 1, 0
          %v359 = vsel %vm355, 1, 0
          %v360 = vsel %vm356, 1, 0
          %v361 = vadd.s32 %v348, %v357
          %v362 = vadd.s32 %v349, %v358
          %v363 = vadd.s32 %v350, %v359
          %v364 = vadd.s32 %v351, %v360
          %v365 = vperm.slane %v277, 7
          %vm366 = vcmp.eq.s32.totalorder %v365, %v265
          %vm367 = vcmp.eq.s32.totalorder %v365, %v266
          %vm368 = vcmp.eq.s32.totalorder %v365, %v267
          %vm369 = vcmp.eq.s32.totalorder %v365, %v268
          %v370 = vsel %vm366, 1, 0
          %v371 = vsel %vm367, 1, 0
          %v372 = vsel %vm368, 1, 0
          %v373 = vsel %vm369, 1, 0
          %v374 = vadd.s32 %v361, %v370
          %v375 = vadd.s32 %v362, %v371
          %v376 = vadd.s32 %v363, %v372
          %v377 = vadd.s32 %v364, %v373
          %v378 = vcvt.s32.f32 %v374
          %v379 = vcvt.s32.f32 %v375
          %v380 = vcvt.s32.f32 %v376
          %v381 = vcvt.s32.f32 %v377
          %v382 = vpack.c.bf16 %v378, %v378
          %v383 = vpack.c.bf16 %v379, %v379
          %v384 = vpack.c.bf16 %v380, %v380
          %v385 = vpack.c.bf16 %v381, %v381
          %s386 = sshra.s32 %s275, 3
          %s387 = sand.u32 %s275, 7
          %s388 = smul.addr %s386, 4
          %s389 = scalar_lea.vmem [#allocation2], %s388
          %390 = vst [vmem:[%s389] sm:$0xf] %v382
          %391 = vst [vmem:[%s389 + $0x4] sm:$0xf] %v383
          %392 = vst [vmem:[%s389 + $0x8] sm:$0xf] %v384
          %393 = vst [vmem:[%s389 + $0xc] sm:$0xf] %v385
        $region45: #{tpu_custom_call.1} parent=39 // loop_footer
          %s274 = sadd.s32 1, %s270
        $region46: #{tpu_custom_call.1} parent=39 // loop_footer_branch
          %269 = sbr.rel target = $region42
        $region47: #{tpu_custom_call.1} parent=39 // loop_exit
          _
        %v394 = vld [vmem:[%s255] sm:$0xff]
        %v395 = vpack.c.bf16 %v394, %v394
        %v396 = vld [vmem:[#allocation2] sm:$0xf]
        %v397 = vld [vmem:[#allocation2 + $0x4] sm:$0xf]
        %v398 = vld [vmem:[#allocation2 + $0x8] sm:$0xf]
        %v399 = vld [vmem:[#allocation2 + $0xc] sm:$0xf]
        %v400 = vld [vmem:[#allocation2 + $0x10] sm:$0xf]
        %v401 = vld [vmem:[#allocation2 + $0x14] sm:$0xf]
        %v402 = vld [vmem:[#allocation2 + $0x18] sm:$0xf]
        %v403 = vld [vmem:[#allocation2 + $0x1c] sm:$0xf]
        %v404 = vld [vmem:[#allocation2 + $0x20] sm:$0xf]
        %v405 = vld [vmem:[#allocation2 + $0x24] sm:$0xf]
        %v406 = vld [vmem:[#allocation2 + $0x28] sm:$0xf]
        %v407 = vld [vmem:[#allocation2 + $0x2c] sm:$0xf]
        %v408 = vld [vmem:[#allocation2 + $0x30] sm:$0xf]
        %v409 = vld [vmem:[#allocation2 + $0x34] sm:$0xf]
        %v410 = vld [vmem:[#allocation2 + $0x38] sm:$0xf]
        %v411 = vld [vmem:[#allocation2 + $0x3c] sm:$0xf]
        %v428 = vunpack.c.l.b16 %v396
        %v429 = vunpack.c.l.b16 %v397
        %v430 = vunpack.c.l.b16 %v398
        %v431 = vunpack.c.l.b16 %v399
        %v432 = vunpack.c.l.b16 %v400
        %v433 = vunpack.c.l.b16 %v401
        %v434 = vunpack.c.l.b16 %v402
        %v435 = vunpack.c.l.b16 %v403
        %v436 = vunpack.c.l.b16 %v404
        %v437 = vunpack.c.l.b16 %v405
        %v438 = vunpack.c.l.b16 %v406
        %v439 = vunpack.c.l.b16 %v407
        %v440 = vunpack.c.l.b16 %v408
        %v441 = vunpack.c.l.b16 %v409
        %v442 = vunpack.c.l.b16 %v410
        %v443 = vunpack.c.l.b16 %v411
        %v444 = vpack.c.b16 %v429, %v428
        %v445 = vpack.c.b16 %v431, %v430
        %v446 = vpack.c.b16 %v433, %v432
        %v447 = vpack.c.b16 %v435, %v434
        %v448 = vpack.c.b16 %v437, %v436
        %v449 = vpack.c.b16 %v439, %v438
        %v450 = vpack.c.b16 %v441, %v440
        %v451 = vpack.c.b16 %v443, %v442
        %460 = vmatpush.bf16.msra.mxu0 %v451
        %461 = vmatpush.bf16.msra.mxu0 %v450
        %462 = vmatpush.bf16.msra.mxu0 %v449
        %463 = vmatpush.bf16.msra.mxu0 %v448
        %464 = vmatpush.bf16.msra.mxu0 %v447
        %465 = vmatpush.bf16.msra.mxu0 %v446
        %466 = vmatpush.bf16.msra.mxu0 %v445
        %467 = vmatpush.bf16.msra.mxu0 %v444
        %468 = vmatmul.bf16.gmra.mxu0 %v395
        %v469 = vpop.f32.mrf.mxu0
        %v470 = vadd.f32 0.0, %v469
        %v471 = vpop.f32.mrf.mxu0
        %472 = vdwg.mxu0
        %s473 = smul.u32 %s25, 128
        %s474 = sshra.s32 %s473, 7
        %s475 = sand.u32 %s473, 127
        %s476 = scalar_lea.vmem %s255, %s474
        %v477 = vld [vmem:[%s476] sm:$0xff]
        %s478 = sld [smem:[#allocation3]]
        %s479 = sadd.f32 %s478, 1.0
        %v480 = vstv %s479
        %v481 = vmul.f32 %v480, %v477
        %v482 = vadd.f32 %v481, %v470
        %v483 = vld [vmem:[%s2] sm:$0xff]
        %v484 = vld [vmem:[%s2 + $0x8] sm:$0xff]
        %v485 = vld [vmem:[%s3] sm:$0xff]
        %v486 = vld [vmem:[%s3 + $0x8] sm:$0xff]
        %488 = vset.pattern.permute.xlu0 0
        %489 = vperm.xlu0 %488, %v485
        %v490 = vpop.permute.xlu0 %489
        %493 = vset.pattern.permute.xlu0 0
        %494 = vperm.xlu0 %493, %v486
        %v495 = vpop.permute.xlu0 %494
        %vm497 = vcmask 64512
        %v499 = vsel %vm497, %v483, 0
        %v502 = vsel %vm497, %v484, 0
        %504 = vmatpush.msra.mxu0 0.0
        %505 = vmatpush.msra.mxu0 0.0
        %506 = vmatpush.msra.mxu0 0.0
        %507 = vmatpush.msra.mxu0 0.0
        %508 = vmatpush.msra.mxu0 0.0
        %509 = vmatpush.msra.mxu0 0.0
        %510 = vmatpush.msra.mxu0 0.0
        %511 = vmatpush.msra.mxu0 0.0
        %512 = vmatpush.msra.mxu0 0.0
        %513 = vmatpush.msra.mxu0 0.0
        %514 = vmatpush.msra.mxu0 0.0
        %515 = vmatpush.msra.mxu0 0.0
        %516 = vmatpush.msra.mxu0 0.0
        %517 = vmatpush.msra.mxu0 0.0
        %518 = vmatpush.msra.mxu0 0.0
        %519 = vmatpush.msra.mxu0 %v482
        %520 = vmatmul.f32.gmra.mxu0 %v499
        %v521 = vpop.f32.mrf.mxu0
        %v522 = vadd.f32 %v490, %v521
        %523 = vmatmul.f32.gmra.mxu0 %v502
        %v524 = vpop.f32.mrf.mxu0
        %v525 = vadd.f32 %v495, %v524
        %526 = vdwg.mxu0
        %v527 = vmax.f32 %v522, 0.0
        %v528 = vmax.f32 %v525, 0.0
        %529 = vst [vmem:[%s251] sm:$0xff] %v527
        %530 = vst [vmem:[%s251 + $0x8] sm:$0xff] %v528
        %s531 = sand.u32 %s159, 1
        %s532 = scalar_lea.sflag [#allocation5], %s531
        %s533 = sand.u32 %s159, 1
        %s534 = smul.addr %s533, 16
        %s535 = scalar_lea.vmem [#allocation4], %s534
        // Predicated region
        $region48: #{tpu_custom_call.1} parent=39 // pred_check
          %p536 = pneg %p169
        $region49: #{tpu_custom_call.1} parent=39 // pred_check_branch
          %538 = sbr.rel (%p536) target = $region51
        $region50: #{tpu_custom_call.1} parent=39 // pred_region
          %540 = vsyncadd %s532, 0
          %s541 = smul.addr %s24, 2
          %s542 = sadd.s32 %s25, %s541
          %s543 = smul.addr %s542, 8
          %s544 = scalar_lea.hbm %s5, %s543
          %s545 = sshll.u32 %s535, 4
          %s546 = int_to_ptr.vmem [resolvable:$true] %s545
          %s547 = sshll.u32 %s544, 4
          %s548 = int_to_ptr.hbm [resolvable:$true] %s547
          %553 = dma.vmem_to_hbm [thread:$0]  %s546, 256, %s548, %s532, 128, 128, 8
        $region51: #{tpu_custom_call.1} parent=39 // pred_fallthru
          _
      $region40: #{tpu_custom_call.1} parent=5 // pred_fallthru
        _
      %p554 = scmp.le.s32.totalorder 2, %s15
      // Predicated region
      $region52: #{tpu_custom_call.1} parent=5 // pred_check
        %p555 = pneg %p554
      $region53: #{tpu_custom_call.1} parent=5 // pred_check_branch
        %557 = sbr.rel (%p555) target = $region55
      $region54: #{tpu_custom_call.1} parent=5 // pred_region
        %s558 = ssub.s32 %s15, 2
        // Predicated region
        $region56: #{tpu_custom_call.1} parent=54 // pred_check
          %p559 = pneg %p175
        $region57: #{tpu_custom_call.1} parent=54 // pred_check_branch
          %561 = sbr.rel (%p559) target = $region59
        $region58: #{tpu_custom_call.1} parent=54 // pred_region
          %s562 = sand.u32 %s160, 1
          %s563 = scalar_lea.sflag [#allocation5], %s562
          %s564 = sand.u32 %s160, 1
          %s565 = smul.addr %s564, 16
          %s566 = scalar_lea.vmem [#allocation4], %s565
          %568 = dma.done %s563, 256
        $region59: #{tpu_custom_call.1} parent=54 // pred_fallthru
          _
      $region55: #{tpu_custom_call.1} parent=5 // pred_fallthru
        _
    $region6: #{tpu_custom_call.1} parent=1 // loop_footer
      %s19 = sadd.s32 1, %s15
    $region7: #{tpu_custom_call.1} parent=1 // loop_footer_branch
      %14 = sbr.rel target = $region3
    $region8: #{tpu_custom_call.1} parent=1 // loop_exit
      _
    %569 = vsyncpa [#allocation5], 1
    %s570 = scalar_lea.sflag [#allocation5], 1
    %571 = vsyncpa %s570, 1

</llo_original>
